<compile_context>
chip_gen: v7x
topology: tpu7x:2x2x1
jax: 0.10.0
libtpu: 0.0.40
codegen_flags: <defaults>
</compile_context>

<pallas_src>
import functools

import jax
import jax.numpy as jnp
from jax.experimental import pallas as pl
from jax.experimental.pallas import tpu as pltpu


def _round_up(n, m):
    return ((n + m - 1) // m) * m


def _pad_axis(x, axis, target):
    pad = target - x.shape[axis]
    if pad == 0:
        return x
    widths = [(0, 0)] * x.ndim
    widths[axis] = (0, pad)
    return jnp.pad(x, widths)


def _pick_tile(hw, want):
    """Largest preferred token tile that divides HW."""
    for t in (want, 2048, 1024, 512, 256, 128):
        if t <= hw and hw % t == 0:
            return t
    return hw


# ----------------------------------------------------------------------------
# Kernel 1: per-batch proxy -> (k^T, v)   (HW-invariant, runs once per batch)
# ----------------------------------------------------------------------------
def _proxy_kv_kernel(
    proxy_ref,            # (1, M_pad, C)    bf16
    wo1_ref, bo1_ref,     # (C, Kp) bf16,  (1, Kp) f32   f_object conv1 (+BN)
    wo2_ref, bo2_ref,     # (Kp, Kp) bf16, (1, Kp) f32   f_object conv2 (+BN)
    wd_ref, bd_ref,       # (C, Kp) bf16,  (1, Kp) f32   f_down (+BN)
    kT_ref,               # (1, Kp, M_pad)  bf16  out (pre-transposed key)
    v_ref,                # (1, M_pad, Kp)  bf16  out (value)
    *, m_valid,
):
    f32 = jnp.float32
    bf16 = jnp.bfloat16
    dot = functools.partial(jnp.dot, preferred_element_type=f32)
    relu = lambda t: jnp.maximum(t, 0.0)

    p = proxy_ref[0]                                         # (M_pad, C) bf16
    k = relu(dot(p, wo1_ref[...]) + bo1_ref[...])            # (M_pad, Kp) f32
    k = relu(dot(k.astype(bf16), wo2_ref[...]) + bo2_ref[...])
    v = relu(dot(p, wd_ref[...]) + bd_ref[...])              # (M_pad, Kp) f32

    # Zero the padded proxy rows (relu(bias) != 0 otherwise) for robustness;
    # the -1e30 sim mask in the pixel kernel keeps the softmax exact anyway.
    row = jax.lax.broadcasted_iota(jnp.int32, k.shape, 0)    # (M_pad, Kp)
    valid = (row < m_valid).astype(f32)
    k = k * valid
    v = v * valid

    kT_ref[0] = k.T.astype(bf16)                             # (Kp, M_pad)
    v_ref[0] = v.astype(bf16)


# ----------------------------------------------------------------------------
# Kernel 2: per-(batch, token-tile) pixel path + attention + fusion
# ----------------------------------------------------------------------------
def _ocr_pixel_kernel(
    feats_ref,            # (1, T, C)        bf16
    kT_ref,               # (1, Kp, M_pad)   bf16  (HW-invariant)
    v_ref,                # (1, M_pad, Kp)   bf16  (HW-invariant)
    mask_ref,             # (1, M_pad)       f32   (0 valid / -1e30 pad)
    wp1_ref, bp1_ref,     # (C, Kp) bf16,  (1, Kp) f32
    wp2_ref, bp2_ref,     # (Kp, Kp) bf16, (1, Kp) f32   (attention scale folded)
    wu_ref, bu_ref,       # (Kp, C) bf16,  (1, C) f32
    wc_ctx_ref, wc_x_ref, bc_ref,  # (C, Cp) bf16 x2, (1, Cp) f32
    out_ref,              # (1, T, Cp)       bf16
):
    f32 = jnp.float32
    bf16 = jnp.bfloat16
    dot = functools.partial(jnp.dot, preferred_element_type=f32)
    relu = lambda t: jnp.maximum(t, 0.0)

    x = feats_ref[0]                                         # (T, C) bf16

    # f_pixel: conv+BN+ReLU x2 (BN folded; K**-0.5 folded into wp2/bp2 -- valid
    # because the positive scale commutes with ReLU).
    q = relu(dot(x, wp1_ref[...]) + bp1_ref[...])            # (T, Kp) f32
    q = relu(dot(q.astype(bf16), wp2_ref[...]) + bp2_ref[...])

    # Attention over the (padded) object axis; key is pre-transposed so this is
    # a plain (T,Kp)@(Kp,M_pad) MXU matmul.
    sim = dot(q.astype(bf16), kT_ref[0]) + mask_ref[...]     # (T, M_pad) f32
    sim = jnp.exp(sim - jnp.max(sim, axis=-1, keepdims=True))
    # Deferred softmax normalization: bf16 numerator matmul, f32 denominator
    # row-sum, approx EUP reciprocal.
    num = dot(sim.astype(bf16), v_ref[0])                    # (T, Kp) f32
    denom = jnp.sum(sim, axis=-1, keepdims=True)             # (T, 1)  f32
    ctx = num * pl.reciprocal(denom, approx=True)

    # f_up: conv + BN + ReLU.
    ctx = relu(dot(ctx.astype(bf16), wu_ref[...]) + bu_ref[...])   # (T, C) f32

    # conv_bn_dropout: concat([ctx, x]) @ wc == ctx @ wc_ctx + x @ wc_x.
    out = relu(dot(ctx.astype(bf16), wc_ctx_ref[...])
               + dot(x, wc_x_ref[...])
               + bc_ref[...])                                # (T, Cp) f32
    out_ref[0] = out.astype(out_ref.dtype)


# ----------------------------------------------------------------------------
# Wrapper
# ----------------------------------------------------------------------------
def spatial_ocr_pallas(feats_tok, proxy_tok, params, tile_hw=512,
                       vmem_limit_bytes=48 * 1024 * 1024):
    """feats_tok: (B, HW, C) [bf16 preferred], proxy_tok: (B, M, C).

    Returns (B, HW, Cout_pad) bf16 with Cout_pad = round_up(Cout, 128).
    The channel padding is kept (lane-dense output); downstream consumers
    should use zero-padded weights and slice only at the model edge.
    """
    B, HW, C = feats_tok.shape
    _, M, _ = proxy_tok.shape
    K = params["wp1"].shape[1]
    Cout = params["wc"].shape[1]

    K_pad = _round_up(K, 128)
    M_pad = _round_up(M, 128)
    Cout_pad = _round_up(Cout, 128)
    T = _pick_tile(HW, tile_hw)

    bf16 = jnp.bfloat16
    f32 = jnp.float32
    scale = float(K) ** -0.5

    pad_cols = lambda a, n: _pad_axis(a, 1, n)
    pad_rows = lambda a, n: _pad_axis(a, 0, n)

    # Weights -> bf16 (MXU operands); biases / mask -> f32 (post-accumulate adds).
    wp1 = pad_cols(params["wp1"], K_pad).astype(bf16)
    bp1 = pad_cols(params["bp1"], K_pad).astype(f32)
    wp2 = pad_cols(pad_rows(params["wp2"] * scale, K_pad), K_pad).astype(bf16)
    bp2 = pad_cols(params["bp2"] * scale, K_pad).astype(f32)
    wo1 = pad_cols(params["wo1"], K_pad).astype(bf16)
    bo1 = pad_cols(params["bo1"], K_pad).astype(f32)
    wo2 = pad_cols(pad_rows(params["wo2"], K_pad), K_pad).astype(bf16)
    bo2 = pad_cols(params["bo2"], K_pad).astype(f32)
    wd = pad_cols(params["wd"], K_pad).astype(bf16)
    bd = pad_cols(params["bd"], K_pad).astype(f32)
    wu = pad_rows(params["wu"], K_pad).astype(bf16)
    bu = params["bu"].astype(f32)
    wc_ctx = pad_cols(params["wc"][:C, :], Cout_pad).astype(bf16)
    wc_x = pad_cols(params["wc"][C:, :], Cout_pad).astype(bf16)
    bc = pad_cols(params["bc"], Cout_pad).astype(f32)

    # Additive mask over padded object columns: exp(-1e30 - rowmax) == 0 in f32.
    mask = jnp.where(jnp.arange(M_pad)[None, :] < M, 0.0, -1e30).astype(f32)

    feats_b = feats_tok if feats_tok.dtype == bf16 else feats_tok.astype(bf16)
    proxy_b = _pad_axis(proxy_tok, 1, M_pad).astype(bf16)

    def const_spec(shape):
        nd = len(shape)
        return pl.BlockSpec(shape, lambda *args, _nd=nd: (0,) * _nd)

    # --- stage 1: per-batch k^T / v (HW-invariant, tiny) ---------------------
    kT, v = pl.pallas_call(
        functools.partial(_proxy_kv_kernel, m_valid=M),
        out_shape=(jax.ShapeDtypeStruct((B, K_pad, M_pad), bf16),
                   jax.ShapeDtypeStruct((B, M_pad, K_pad), bf16)),
        grid_spec=pltpu.PrefetchScalarGridSpec(
            num_scalar_prefetch=0,
            grid=(B,),
            in_specs=[
                pl.BlockSpec((1, M_pad, C), lambda b: (b, 0, 0)),
                const_spec(wo1.shape), const_spec(bo1.shape),
                const_spec(wo2.shape), const_spec(bo2.shape),
                const_spec(wd.shape), const_spec(bd.shape),
            ],
            out_specs=[
                pl.BlockSpec((1, K_pad, M_pad), lambda b: (b, 0, 0)),
                pl.BlockSpec((1, M_pad, K_pad), lambda b: (b, 0, 0)),
            ],
        ),
        compiler_params=pltpu.CompilerParams(
            dimension_semantics=("parallel",)),
    )(proxy_b, wo1, bo1, wo2, bo2, wd, bd)

    # --- stage 2: pixel path + attention + fusion over (B, HW//T) ------------
    grid = (B, HW // T)

    out_pad = pl.pallas_call(
        _ocr_pixel_kernel,
        out_shape=jax.ShapeDtypeStruct((B, HW, Cout_pad), bf16),
        grid_spec=pltpu.PrefetchScalarGridSpec(
            num_scalar_prefetch=0,
            grid=grid,
            in_specs=[
                pl.BlockSpec((1, T, C), lambda b, j: (b, j, 0)),          # feats tile
                pl.BlockSpec((1, K_pad, M_pad), lambda b, j: (b, 0, 0)),  # k^T (HW-inv.)
                pl.BlockSpec((1, M_pad, K_pad), lambda b, j: (b, 0, 0)),  # v   (HW-inv.)
                const_spec(mask.shape),
                const_spec(wp1.shape), const_spec(bp1.shape),
                const_spec(wp2.shape), const_spec(bp2.shape),
                const_spec(wu.shape), const_spec(bu.shape),
                const_spec(wc_ctx.shape), const_spec(wc_x.shape), const_spec(bc.shape),
            ],
            out_specs=pl.BlockSpec((1, T, Cout_pad), lambda b, j: (b, j, 0)),
        ),
        compiler_params=pltpu.CompilerParams(
            dimension_semantics=("parallel", "parallel"),
            vmem_limit_bytes=vmem_limit_bytes),
    )(feats_b, kT, v, mask, wp1, bp1, wp2, bp2, wu, bu, wc_ctx, wc_x, bc)

    return out_pad


# ----------------------------------------------------------------------------
# Parameter construction (deterministic, BN folded into conv weight/bias)
# ----------------------------------------------------------------------------
def _fold_bn(key, cin, cout, eps=1e-5):
    """Return (W_eff, b_eff) for conv(1x1, no bias) followed by eval BN."""
    kw, kg, kb, km, kv = jax.random.split(key, 5)
    w = jax.random.normal(kw, (cin, cout), jnp.float32) * (2.0 / cin) ** 0.5
    gamma = 1.0 + 0.1 * jax.random.normal(kg, (cout,), jnp.float32)
    beta = 0.1 * jax.random.normal(kb, (cout,), jnp.float32)
    mean = 0.1 * jax.random.normal(km, (cout,), jnp.float32)
    var = jnp.abs(jax.random.normal(kv, (cout,), jnp.float32)) + 0.5
    s = gamma / jnp.sqrt(var + eps)
    return w * s[None, :], (beta - mean * s)[None, :]


def make_params(in_channels, key_channels, out_channels, seed=0):
    keys = jax.random.split(jax.random.PRNGKey(seed), 8)
    p = {}
    p["wp1"], p["bp1"] = _fold_bn(keys[0], in_channels, key_channels)
    p["wp2"], p["bp2"] = _fold_bn(keys[1], key_channels, key_channels)
    p["wo1"], p["bo1"] = _fold_bn(keys[2], in_channels, key_channels)
    p["wo2"], p["bo2"] = _fold_bn(keys[3], key_channels, key_channels)
    p["wd"], p["bd"] = _fold_bn(keys[4], in_channels, key_channels)
    p["wu"], p["bu"] = _fold_bn(keys[5], key_channels, in_channels)
    p["wc"], p["bc"] = _fold_bn(keys[6], 2 * in_channels, out_channels)
    return p


# ----------------------------------------------------------------------------
# Pure-JAX f32 reference (same math, unpadded / unfused weights)
# ----------------------------------------------------------------------------
def spatial_ocr_ref(feats_tok, proxy_tok, p):
    relu = lambda t: jnp.maximum(t, 0.0)
    q = relu(relu(feats_tok @ p["wp1"] + p["bp1"]) @ p["wp2"] + p["bp2"])
    k = relu(relu(proxy_tok @ p["wo1"] + p["bo1"]) @ p["wo2"] + p["bo2"])
    v = relu(proxy_tok @ p["wd"] + p["bd"])
    K = q.shape[-1]
    sim = jnp.einsum("blk,bmk->blm", q, k) * (K ** -0.5)
    sim = jax.nn.softmax(sim, axis=-1)
    ctx = jnp.einsum("blm,bmk->blk", sim, v)
    ctx = relu(ctx @ p["wu"] + p["bu"])
    cat = jnp.concatenate([ctx, feats_tok], axis=-1)
    return relu(cat @ p["wc"] + p["bc"])


if __name__ == "__main__":
    B = 2
    in_channels = 32
    key_channels = 16
    out_channels = 32
    H = W = 16                 # feats spatial -> HW = 256 tokens
    M = 8                      # proxy "object regions" (proxy is N x C x 8 x 1)

    k1, k2 = jax.random.split(jax.random.PRNGKey(0))
    # NCHW inputs (as the PyTorch module expects)
    feats_nchw = jax.random.normal(k1, (B, in_channels, H, W), jnp.float32)
    proxy_nchw = jax.random.normal(k2, (B, in_channels, M, 1), jnp.float32)

    # NCHW -> (B, L, C) token layout (glue, outside the kernel).  feats arrive
    # in bf16 as if produced upstream by conv3x3_ocr, so the kernel has no
    # extra f32->bf16 HBM cast pass in front of it.
    feats_tok = feats_nchw.reshape(B, in_channels, H * W).transpose(0, 2, 1)
    proxy_tok = proxy_nchw.reshape(B, in_channels, M).transpose(0, 2, 1)
    feats_tok_bf16 = feats_tok.astype(jnp.bfloat16)
    proxy_tok_bf16 = proxy_tok.astype(jnp.bfloat16)

    params = make_params(in_channels, key_channels, out_channels, seed=0)

    out_pad = spatial_ocr_pallas(feats_tok_bf16, proxy_tok_bf16, params,
                                 tile_hw=512)
    out_pad = jax.block_until_ready(out_pad)

    # Reference sees the same bf16-rounded inputs (upcast to f32).
    ref = spatial_ocr_ref(feats_tok_bf16.astype(jnp.float32),
                          proxy_tok_bf16.astype(jnp.float32), params)

    assert out_pad.shape == (B, H * W, _round_up(out_channels, 128))
    # Output stays padded bf16 (lane-dense); slice/cast here only for checking.
    out = out_pad[:, :, :out_channels].astype(jnp.float32)
    rel_err = jnp.linalg.norm(out - ref) / jnp.linalg.norm(ref)
    assert float(rel_err) < 3e-2, f"relative error too large: {float(rel_err)}"

    # (B, HW, Cout) -> NCHW output of the PyTorch module, if needed:
    # out_nchw = out.transpose(0, 2, 1).reshape(B, out_channels, H, W)

    print("KERNEL_OK")
</pallas_src>

<mosaic_0001>
module attributes {stable_mosaic.version = 11 : i64} {
  func.func @_proxy_kv_kernel(%arg0: i32, %arg1: memref<1x128x32xbf16, #tpu.memory_space<vmem>>, %arg2: memref<32x128xbf16, #tpu.memory_space<vmem>>, %arg3: memref<1x128xf32, #tpu.memory_space<vmem>>, %arg4: memref<128x128xbf16, #tpu.memory_space<vmem>>, %arg5: memref<1x128xf32, #tpu.memory_space<vmem>>, %arg6: memref<32x128xbf16, #tpu.memory_space<vmem>>, %arg7: memref<1x128xf32, #tpu.memory_space<vmem>>, %arg8: memref<1x128x128xbf16, #tpu.memory_space<vmem>>, %arg9: memref<1x128x128xbf16, #tpu.memory_space<vmem>>) attributes {dimension_semantics = [#tpu.dimension_semantics<parallel>], iteration_bounds = array<i64: 2>, scalar_prefetch = 0 : i64, scratch_operands = 0 : i64, tpu.core_type = #tpu.core_type<tc>, window_params = [{transform_indices = @transform_0, window_bounds = array<i64: 1, 128, 32>}, {pipeline_mode = #tpu.pipeline_mode<synchronous>, transform_indices = @transform_1, window_bounds = array<i64: 32, 128>}, {pipeline_mode = #tpu.pipeline_mode<synchronous>, transform_indices = @transform_2, window_bounds = array<i64: 1, 128>}, {pipeline_mode = #tpu.pipeline_mode<synchronous>, transform_indices = @transform_3, window_bounds = array<i64: 128, 128>}, {pipeline_mode = #tpu.pipeline_mode<synchronous>, transform_indices = @transform_4, window_bounds = array<i64: 1, 128>}, {pipeline_mode = #tpu.pipeline_mode<synchronous>, transform_indices = @transform_5, window_bounds = array<i64: 32, 128>}, {pipeline_mode = #tpu.pipeline_mode<synchronous>, transform_indices = @transform_6, window_bounds = array<i64: 1, 128>}, {transform_indices = @transform_7, window_bounds = array<i64: 1, 128, 128>}, {transform_indices = @transform_8, window_bounds = array<i64: 1, 128, 128>}]} {
    %c0 = arith.constant 0 : index
    %c0_0 = arith.constant 0 : index
    %c0_1 = arith.constant 0 : index
    %0 = vector.load %arg1[%c0, %c0_0, %c0_1] : memref<1x128x32xbf16, #tpu.memory_space<vmem>>, vector<1x128x32xbf16>
    %1 = vector.shape_cast %0 : vector<1x128x32xbf16> to vector<128x32xbf16>
    %c0_2 = arith.constant 0 : index
    %c0_3 = arith.constant 0 : index
    %2 = vector.load %arg2[%c0_2, %c0_3] : memref<32x128xbf16, #tpu.memory_space<vmem>>, vector<32x128xbf16>
    %cst = arith.constant dense<0.000000e+00> : vector<128x128xf32>
    %3 = tpu.matmul %1, %2, %cst {dimension_numbers = #tpu.dot_dimension_numbers<[1], [0], [0], [1], [0, 0, 1, 1], [], []>} : vector<128x32xbf16>, vector<32x128xbf16>, vector<128x128xf32> -> vector<128x128xf32>
    %c0_4 = arith.constant 0 : index
    %c0_5 = arith.constant 0 : index
    %4 = vector.load %arg3[%c0_4, %c0_5] : memref<1x128xf32, #tpu.memory_space<vmem>>, vector<1x128xf32>
    %5 = vector.broadcast %4 : vector<1x128xf32> to vector<128x128xf32>
    %6 = arith.addf %3, %5 : vector<128x128xf32>
    %cst_6 = arith.constant 0.000000e+00 : f32
    %7 = vector.broadcast %cst_6 : f32 to vector<128x128xf32>
    %8 = arith.maximumf %6, %7 : vector<128x128xf32>
    %9 = arith.truncf %8 : vector<128x128xf32> to vector<128x128xbf16>
    %c0_7 = arith.constant 0 : index
    %c0_8 = arith.constant 0 : index
    %10 = vector.load %arg4[%c0_7, %c0_8] : memref<128x128xbf16, #tpu.memory_space<vmem>>, vector<128x128xbf16>
    %cst_9 = arith.constant dense<0.000000e+00> : vector<128x128xf32>
    %11 = tpu.matmul %9, %10, %cst_9 {dimension_numbers = #tpu.dot_dimension_numbers<[1], [0], [0], [1], [0, 0, 1, 1], [], []>} : vector<128x128xbf16>, vector<128x128xbf16>, vector<128x128xf32> -> vector<128x128xf32>
    %c0_10 = arith.constant 0 : index
    %c0_11 = arith.constant 0 : index
    %12 = vector.load %arg5[%c0_10, %c0_11] : memref<1x128xf32, #tpu.memory_space<vmem>>, vector<1x128xf32>
    %13 = vector.broadcast %12 : vector<1x128xf32> to vector<128x128xf32>
    %14 = arith.addf %11, %13 : vector<128x128xf32>
    %cst_12 = arith.constant 0.000000e+00 : f32
    %15 = vector.broadcast %cst_12 : f32 to vector<128x128xf32>
    %16 = arith.maximumf %14, %15 : vector<128x128xf32>
    %c0_13 = arith.constant 0 : index
    %c0_14 = arith.constant 0 : index
    %17 = vector.load %arg6[%c0_13, %c0_14] : memref<32x128xbf16, #tpu.memory_space<vmem>>, vector<32x128xbf16>
    %cst_15 = arith.constant dense<0.000000e+00> : vector<128x128xf32>
    %18 = tpu.matmul %1, %17, %cst_15 {dimension_numbers = #tpu.dot_dimension_numbers<[1], [0], [0], [1], [0, 0, 1, 1], [], []>} : vector<128x32xbf16>, vector<32x128xbf16>, vector<128x128xf32> -> vector<128x128xf32>
    %c0_16 = arith.constant 0 : index
    %c0_17 = arith.constant 0 : index
    %19 = vector.load %arg7[%c0_16, %c0_17] : memref<1x128xf32, #tpu.memory_space<vmem>>, vector<1x128xf32>
    %20 = vector.broadcast %19 : vector<1x128xf32> to vector<128x128xf32>
    %21 = arith.addf %18, %20 : vector<128x128xf32>
    %cst_18 = arith.constant 0.000000e+00 : f32
    %22 = vector.broadcast %cst_18 : f32 to vector<128x128xf32>
    %23 = arith.maximumf %21, %22 : vector<128x128xf32>
    %24 = tpu.iota {dimensions = array<i32: 0>} : vector<128x128xi32>
    %c8_i32 = arith.constant 8 : i32
    %25 = vector.broadcast %c8_i32 : i32 to vector<128x128xi32>
    %26 = arith.cmpi slt, %24, %25 : vector<128x128xi32>
    %27 = arith.extui %26 : vector<128x128xi1> to vector<128x128xi32>
    %28 = arith.sitofp %27 : vector<128x128xi32> to vector<128x128xf32>
    %29 = arith.mulf %16, %28 : vector<128x128xf32>
    %30 = arith.mulf %23, %28 : vector<128x128xf32>
    %31 = tpu.transpose %29, [1, 0] : vector<128x128xf32> -> vector<128x128xf32>
    %32 = arith.truncf %31 : vector<128x128xf32> to vector<128x128xbf16>
    %c0_19 = arith.constant 0 : index
    %c0_20 = arith.constant 0 : index
    %c0_21 = arith.constant 0 : index
    %33 = vector.load %arg8[%c0_19, %c0_20, %c0_21] : memref<1x128x128xbf16, #tpu.memory_space<vmem>>, vector<1x128x128xbf16>
    %34 = vector.shape_cast %33 : vector<1x128x128xbf16> to vector<128x128xbf16>
    %35 = vector.shape_cast %32 : vector<128x128xbf16> to vector<1x128x128xbf16>
    tpu.vector_store %arg8[%c0_19, %c0_20, %c0_21], %35 {strides = array<i32>} : memref<1x128x128xbf16, #tpu.memory_space<vmem>>, vector<1x128x128xbf16>,
    %36 = arith.truncf %30 : vector<128x128xf32> to vector<128x128xbf16>
    %c0_22 = arith.constant 0 : index
    %c0_23 = arith.constant 0 : index
    %c0_24 = arith.constant 0 : index
    %37 = vector.load %arg9[%c0_22, %c0_23, %c0_24] : memref<1x128x128xbf16, #tpu.memory_space<vmem>>, vector<1x128x128xbf16>
    %38 = vector.shape_cast %37 : vector<1x128x128xbf16> to vector<128x128xbf16>
    %39 = vector.shape_cast %36 : vector<128x128xbf16> to vector<1x128x128xbf16>
    tpu.vector_store %arg9[%c0_22, %c0_23, %c0_24], %39 {strides = array<i32>} : memref<1x128x128xbf16, #tpu.memory_space<vmem>>, vector<1x128x128xbf16>,
    return
  }
  func.func @transform_0(%arg0: i32) -> (i32, i32, i32) {
    %c0_i32 = arith.constant 0 : i32
    %c0_i32_0 = arith.constant 0 : i32
    %c0_i32_1 = arith.constant 0 : i32
    return %arg0, %c0_i32, %c0_i32_0 : i32, i32, i32
  }
  func.func @transform_1(%arg0: i32) -> (i32, i32) {
    %c0_i32 = arith.constant 0 : i32
    %c0_i32_0 = arith.constant 0 : i32
    %c0_i32_1 = arith.constant 0 : i32
    return %c0_i32, %c0_i32_0 : i32, i32
  }
  func.func @transform_2(%arg0: i32) -> (i32, i32) {
    %c0_i32 = arith.constant 0 : i32
    %c0_i32_0 = arith.constant 0 : i32
    %c0_i32_1 = arith.constant 0 : i32
    return %c0_i32, %c0_i32_0 : i32, i32
  }
  func.func @transform_3(%arg0: i32) -> (i32, i32) {
    %c0_i32 = arith.constant 0 : i32
    %c0_i32_0 = arith.constant 0 : i32
    %c0_i32_1 = arith.constant 0 : i32
    return %c0_i32, %c0_i32_0 : i32, i32
  }
  func.func @transform_4(%arg0: i32) -> (i32, i32) {
    %c0_i32 = arith.constant 0 : i32
    %c0_i32_0 = arith.constant 0 : i32
    %c0_i32_1 = arith.constant 0 : i32
    return %c0_i32, %c0_i32_0 : i32, i32
  }
  func.func @transform_5(%arg0: i32) -> (i32, i32) {
    %c0_i32 = arith.constant 0 : i32
    %c0_i32_0 = arith.constant 0 : i32
    %c0_i32_1 = arith.constant 0 : i32
    return %c0_i32, %c0_i32_0 : i32, i32
  }
  func.func @transform_6(%arg0: i32) -> (i32, i32) {
    %c0_i32 = arith.constant 0 : i32
    %c0_i32_0 = arith.constant 0 : i32
    %c0_i32_1 = arith.constant 0 : i32
    return %c0_i32, %c0_i32_0 : i32, i32
  }
  func.func @transform_7(%arg0: i32) -> (i32, i32, i32) {
    %c0_i32 = arith.constant 0 : i32
    %c0_i32_0 = arith.constant 0 : i32
    %c0_i32_1 = arith.constant 0 : i32
    return %arg0, %c0_i32, %c0_i32_0 : i32, i32, i32
  }
  func.func @transform_8(%arg0: i32) -> (i32, i32, i32) {
    %c0_i32 = arith.constant 0 : i32
    %c0_i32_0 = arith.constant 0 : i32
    %c0_i32_1 = arith.constant 0 : i32
    return %arg0, %c0_i32, %c0_i32_0 : i32, i32, i32
  }
}

</mosaic_0001>

<llo_original>
// kernel: tpu_custom_call.1
$region0: #{tpu_custom_call.1}
  #allocation0 [shape = 'u32[]', space=smem, size = 0x4, offset = 0x4, fixed_abs, tag = 'smem constant byte address 0x4 - core index']
  #allocation1 [shape = 'u32[144,128]{1,0:T(1,128)}', space=vmem, size = 0x12000, scoped, tag = 'internal scratch']
  %s0 = inlined_call_operand.vmem [shape: bf16[2,128,32], index: 0, kind: input, shape index: {}]
  %s1 = inlined_call_operand.vmem [shape: bf16[32,128], index: 1, kind: input, shape index: {}]
  %s2 = inlined_call_operand.vmem [shape: f32[1,128], index: 2, kind: input, shape index: {}]
  %s3 = inlined_call_operand.vmem [shape: bf16[128,128], index: 3, kind: input, shape index: {}]
  %s4 = inlined_call_operand.vmem [shape: f32[1,128], index: 4, kind: input, shape index: {}]
  %s5 = inlined_call_operand.vmem [shape: bf16[32,128], index: 5, kind: input, shape index: {}]
  %s6 = inlined_call_operand.vmem [shape: f32[1,128], index: 6, kind: input, shape index: {}]
  %s7 = inlined_call_operand.hbm [shape: bf16[2,128,128], index: 7, kind: output, shape index: {0}]
  %s8 = inlined_call_operand.hbm [shape: bf16[2,128,128], index: 8, kind: output, shape index: {1}]
  %9 = xla_tuple %s7, %s8
  %s10 = sld [smem:[#allocation0]]
  $region69: #{tpu_custom_call.1} parent=0
    _
  %s12 = ssub.s32 1, %s10
  %s13 = scalar_select 0, %s12, %s10
  $region1: #{tpu_custom_call.1} parent=0
    #allocation2 [shape = 'u8[65536]{0}', space=vmem, size = 0x10000, scoped, tag = 'output window, operand 0']
    #allocation3 [shape = 's32[2]{0}', space=sflag, size = 0x8, scoped, tag = 'scoped memory for tpu_custom_call.1']
    #allocation4 [shape = 'u8[65536]{0}', space=vmem, size = 0x10000, scoped, tag = 'output window, operand 1']
    #allocation5 [shape = 's32[2]{0}', space=sflag, size = 0x8, scoped, tag = 'scoped memory for tpu_custom_call.1']
    %14 = vsyncpa [#allocation3], 0
    %s15 = scalar_lea.sflag [#allocation3], 1
    %16 = vsyncpa %s15, 0
    %17 = vsyncpa [#allocation5], 0
    %s18 = scalar_lea.sflag [#allocation5], 1
    %19 = vsyncpa %s18, 0
    loop: start=0, step=1, limit=4
    $region2: #{tpu_custom_call.1} parent=1 // loop_pre_header
      _
    $region3: #{tpu_custom_call.1} parent=1 // loop_header
      %s21 = sphi 0, %s25
      %p22 = scmp.ge.s32.totalorder %s21, 4
      %s31 = sphi 0, %s33
      %s34 = sphi 0, %s31
      %s35 = sphi 0, %s34
      %s51 = sphi 0, %s35
      %s55 = sphi 0, %s55
      %s57 = sphi 0, %s55
      %s58 = sphi 0, %s57
      %s72 = sphi 0, %s58
      %s76 = sphi 0, %s76
      %s78 = sphi 0, %s76
      %s79 = sphi 0, %s78
      %s93 = sphi 0, %s79
      %s97 = sphi 0, %s97
      %s99 = sphi 0, %s97
      %s100 = sphi 0, %s99
      %s114 = sphi 0, %s100
      %s118 = sphi 0, %s118
      %s120 = sphi 0, %s118
      %s121 = sphi 0, %s120
      %s135 = sphi 0, %s121
      %s139 = sphi 0, %s139
      %s141 = sphi 0, %s139
      %s142 = sphi 0, %s141
      %s156 = sphi 0, %s142
      %s160 = sphi 0, %s160
      %s162 = sphi 0, %s160
      %s163 = sphi 0, %s162
      %s177 = sphi 0, %s163
      %s183 = sphi 0, %s185
      %s186 = sphi 0, %s183
      %s187 = sphi 0, %s186
      %s203 = sphi 0, %s187
      %s209 = sphi 0, %s211
      %s212 = sphi 0, %s209
      %s213 = sphi 0, %s212
      %s229 = sphi 0, %s213
    $region4: #{tpu_custom_call.1} parent=1 // loop_header_branch
      %24 = sbr.rel (%p22) target = $region8
    $region5: #{tpu_custom_call.1} parent=1 // loop_body
      %s26 = ssub.s32 %s21, 1
      %s27 = ssub.s32 %s21, 2
      %s28 = sadd.s32 %s21, 1
      %s29 = ssub.s32 %s21, %s28
      %p30 = scmp.eq.s32.totalorder %s29, 0
      %s32 = sadd.s32 %s31, 1
      %s33 = scalar_select %p30, %s31, %s32
      %p36 = pneg %p30
      %p37 = scmp.eq.s32.totalorder %s21, 1
      %p38 = por %p36, %p37
      %p39 = scmp.ne.s32.totalorder %s31, %s34
      %p40 = scmp.eq.s32.totalorder %s21, 0
      %p41 = por %p39, %p40
      %p42 = scmp.ne.s32.totalorder %s31, %s34
      %p43 = scmp.eq.s32.totalorder %s26, 1
      %p44 = por %p42, %p43
      %p45 = scmp.ne.s32.totalorder %s34, %s35
      %p46 = scmp.eq.s32.totalorder %s26, 0
      %p47 = por %p45, %p46
      %p48 = scmp.ne.s32.totalorder %s34, %s35
      %p49 = scmp.eq.s32.totalorder %s27, 1
      %p50 = por %p48, %p49
      %p52 = scmp.ne.s32.totalorder %s35, %s51
      %p53 = scmp.eq.s32.totalorder %s27, 0
      %p54 = por %p52, %p53
      %s56 = sadd.s32 %s55, 1
      %p59 = scmp.eq.s32.totalorder %s21, 1
      %p60 = scmp.ne.s32.totalorder %s55, %s57
      %p61 = scmp.eq.s32.totalorder %s21, 0
      %p62 = por %p60, %p61
      %p63 = scmp.ne.s32.totalorder %s55, %s57
      %p64 = scmp.eq.s32.totalorder %s26, 1
      %p65 = por %p63, %p64
      %p66 = scmp.ne.s32.totalorder %s57, %s58
      %p67 = scmp.eq.s32.totalorder %s26, 0
      %p68 = por %p66, %p67
      %p69 = scmp.ne.s32.totalorder %s57, %s58
      %p70 = scmp.eq.s32.totalorder %s27, 1
      %p71 = por %p69, %p70
      %p73 = scmp.ne.s32.totalorder %s58, %s72
      %p74 = scmp.eq.s32.totalorder %s27, 0
      %p75 = por %p73, %p74
      %s77 = sadd.s32 %s76, 1
      %p80 = scmp.eq.s32.totalorder %s21, 1
      %p81 = scmp.ne.s32.totalorder %s76, %s78
      %p82 = scmp.eq.s32.totalorder %s21, 0
      %p83 = por %p81, %p82
      %p84 = scmp.ne.s32.totalorder %s76, %s78
      %p85 = scmp.eq.s32.totalorder %s26, 1
      %p86 = por %p84, %p85
      %p87 = scmp.ne.s32.totalorder %s78, %s79
      %p88 = scmp.eq.s32.totalorder %s26, 0
      %p89 = por %p87, %p88
      %p90 = scmp.ne.s32.totalorder %s78, %s79
      %p91 = scmp.eq.s32.totalorder %s27, 1
      %p92 = por %p90, %p91
      %p94 = scmp.ne.s32.totalorder %s79, %s93
      %p95 = scmp.eq.s32.totalorder %s27, 0
      %p96 = por %p94, %p95
      %s98 = sadd.s32 %s97, 1
      %p101 = scmp.eq.s32.totalorder %s21, 1
      %p102 = scmp.ne.s32.totalorder %s97, %s99
      %p103 = scmp.eq.s32.totalorder %s21, 0
      %p104 = por %p102, %p103
      %p105 = scmp.ne.s32.totalorder %s97, %s99
      %p106 = scmp.eq.s32.totalorder %s26, 1
      %p107 = por %p105, %p106
      %p108 = scmp.ne.s32.totalorder %s99, %s100
      %p109 = scmp.eq.s32.totalorder %s26, 0
      %p110 = por %p108, %p109
      %p111 = scmp.ne.s32.totalorder %s99, %s100
      %p112 = scmp.eq.s32.totalorder %s27, 1
      %p113 = por %p111, %p112
      %p115 = scmp.ne.s32.totalorder %s100, %s114
      %p116 = scmp.eq.s32.totalorder %s27, 0
      %p117 = por %p115, %p116
      %s119 = sadd.s32 %s118, 1
      %p122 = scmp.eq.s32.totalorder %s21, 1
      %p123 = scmp.ne.s32.totalorder %s118, %s120
      %p124 = scmp.eq.s32.totalorder %s21, 0
      %p125 = por %p123, %p124
      %p126 = scmp.ne.s32.totalorder %s118, %s120
      %p127 = scmp.eq.s32.totalorder %s26, 1
      %p128 = por %p126, %p127
      %p129 = scmp.ne.s32.totalorder %s120, %s121
      %p130 = scmp.eq.s32.totalorder %s26, 0
      %p131 = por %p129, %p130
      %p132 = scmp.ne.s32.totalorder %s120, %s121
      %p133 = scmp.eq.s32.totalorder %s27, 1
      %p134 = por %p132, %p133
      %p136 = scmp.ne.s32.totalorder %s121, %s135
      %p137 = scmp.eq.s32.totalorder %s27, 0
      %p138 = por %p136, %p137
      %s140 = sadd.s32 %s139, 1
      %p143 = scmp.eq.s32.totalorder %s21, 1
      %p144 = scmp.ne.s32.totalorder %s139, %s141
      %p145 = scmp.eq.s32.totalorder %s21, 0
      %p146 = por %p144, %p145
      %p147 = scmp.ne.s32.totalorder %s139, %s141
      %p148 = scmp.eq.s32.totalorder %s26, 1
      %p149 = por %p147, %p148
      %p150 = scmp.ne.s32.totalorder %s141, %s142
      %p151 = scmp.eq.s32.totalorder %s26, 0
      %p152 = por %p150, %p151
      %p153 = scmp.ne.s32.totalorder %s141, %s142
      %p154 = scmp.eq.s32.totalorder %s27, 1
      %p155 = por %p153, %p154
      %p157 = scmp.ne.s32.totalorder %s142, %s156
      %p158 = scmp.eq.s32.totalorder %s27, 0
      %p159 = por %p157, %p158
      %s161 = sadd.s32 %s160, 1
      %p164 = scmp.eq.s32.totalorder %s21, 1
      %p165 = scmp.ne.s32.totalorder %s160, %s162
      %p166 = scmp.eq.s32.totalorder %s21, 0
      %p167 = por %p165, %p166
      %p168 = scmp.ne.s32.totalorder %s160, %s162
      %p169 = scmp.eq.s32.totalorder %s26, 1
      %p170 = por %p168, %p169
      %p171 = scmp.ne.s32.totalorder %s162, %s163
      %p172 = scmp.eq.s32.totalorder %s26, 0
      %p173 = por %p171, %p172
      %p174 = scmp.ne.s32.totalorder %s162, %s163
      %p175 = scmp.eq.s32.totalorder %s27, 1
      %p176 = por %p174, %p175
      %p178 = scmp.ne.s32.totalorder %s163, %s177
      %p179 = scmp.eq.s32.totalorder %s27, 0
      %p180 = por %p178, %p179
      %s181 = ssub.s32 %s21, %s28
      %p182 = scmp.eq.s32.totalorder %s181, 0
      %s184 = sadd.s32 %s183, 1
      %s185 = scalar_select %p182, %s183, %s184
      %p188 = pneg %p182
      %p189 = scmp.eq.s32.totalorder %s21, 1
      %p190 = por %p188, %p189
      %p191 = scmp.ne.s32.totalorder %s183, %s186
      %p192 = scmp.eq.s32.totalorder %s21, 0
      %p193 = por %p191, %p192
      %p194 = scmp.ne.s32.totalorder %s183, %s186
      %p195 = scmp.eq.s32.totalorder %s26, 1
      %p196 = por %p194, %p195
      %p197 = scmp.ne.s32.totalorder %s186, %s187
      %p198 = scmp.eq.s32.totalorder %s26, 0
      %p199 = por %p197, %p198
      %p200 = scmp.ne.s32.totalorder %s186, %s187
      %p201 = scmp.eq.s32.totalorder %s27, 1
      %p202 = por %p200, %p201
      %p204 = scmp.ne.s32.totalorder %s187, %s203
      %p205 = scmp.eq.s32.totalorder %s27, 0
      %p206 = por %p204, %p205
      %s207 = ssub.s32 %s21, %s28
      %p208 = scmp.eq.s32.totalorder %s207, 0
      %s210 = sadd.s32 %s209, 1
      %s211 = scalar_select %p208, %s209, %s210
      %p214 = pneg %p208
      %p215 = scmp.eq.s32.totalorder %s21, 1
      %p216 = por %p214, %p215
      %p217 = scmp.ne.s32.totalorder %s209, %s212
      %p218 = scmp.eq.s32.totalorder %s21, 0
      %p219 = por %p217, %p218
      %p220 = scmp.ne.s32.totalorder %s209, %s212
      %p221 = scmp.eq.s32.totalorder %s26, 1
      %p222 = por %p220, %p221
      %p223 = scmp.ne.s32.totalorder %s212, %s213
      %p224 = scmp.eq.s32.totalorder %s26, 0
      %p225 = por %p223, %p224
      %p226 = scmp.ne.s32.totalorder %s212, %s213
      %p227 = scmp.eq.s32.totalorder %s27, 1
      %p228 = por %p226, %p227
      %p230 = scmp.ne.s32.totalorder %s213, %s229
      %p231 = scmp.eq.s32.totalorder %s27, 0
      %p232 = por %p230, %p231
      %p233 = scmp.le.s32.totalorder 1, %s21
      %p234 = scmp.lt.s32.totalorder %s21, 3
      %p235 = pnand %p233, %p234
      %p236 = pneg %p235
      // Predicated region
      $region9: #{tpu_custom_call.1} parent=5 // pred_check
        _
      $region10: #{tpu_custom_call.1} parent=5 // pred_check_branch
        %238 = sbr.rel (%p235) target = $region12
      $region11: #{tpu_custom_call.1} parent=5 // pred_region
        %s239 = ssub.s32 %s21, 1
        // Predicated region
        $region13: #{tpu_custom_call.1} parent=11 // pred_check
          %p240 = pneg %p68
        $region14: #{tpu_custom_call.1} parent=11 // pred_check_branch
          %242 = sbr.rel (%p240) target = $region16
        $region15: #{tpu_custom_call.1} parent=11 // pred_region
          _
        $region16: #{tpu_custom_call.1} parent=11 // pred_fallthru
          _
        // Predicated region
        $region17: #{tpu_custom_call.1} parent=11 // pred_check
          %p243 = pneg %p89
        $region18: #{tpu_custom_call.1} parent=11 // pred_check_branch
          %245 = sbr.rel (%p243) target = $region20
        $region19: #{tpu_custom_call.1} parent=11 // pred_region
          _
        $region20: #{tpu_custom_call.1} parent=11 // pred_fallthru
          _
        // Predicated region
        $region21: #{tpu_custom_call.1} parent=11 // pred_check
          %p246 = pneg %p110
        $region22: #{tpu_custom_call.1} parent=11 // pred_check_branch
          %248 = sbr.rel (%p246) target = $region24
        $region23: #{tpu_custom_call.1} parent=11 // pred_region
          _
        $region24: #{tpu_custom_call.1} parent=11 // pred_fallthru
          _
        // Predicated region
        $region25: #{tpu_custom_call.1} parent=11 // pred_check
          %p249 = pneg %p131
        $region26: #{tpu_custom_call.1} parent=11 // pred_check_branch
          %251 = sbr.rel (%p249) target = $region28
        $region27: #{tpu_custom_call.1} parent=11 // pred_region
          _
        $region28: #{tpu_custom_call.1} parent=11 // pred_fallthru
          _
        // Predicated region
        $region29: #{tpu_custom_call.1} parent=11 // pred_check
          %p252 = pneg %p152
        $region30: #{tpu_custom_call.1} parent=11 // pred_check_branch
          %254 = sbr.rel (%p252) target = $region32
        $region31: #{tpu_custom_call.1} parent=11 // pred_region
          _
        $region32: #{tpu_custom_call.1} parent=11 // pred_fallthru
          _
        // Predicated region
        $region33: #{tpu_custom_call.1} parent=11 // pred_check
          %p255 = pneg %p173
        $region34: #{tpu_custom_call.1} parent=11 // pred_check_branch
          %257 = sbr.rel (%p255) target = $region36
        $region35: #{tpu_custom_call.1} parent=11 // pred_region
          _
        $region36: #{tpu_custom_call.1} parent=11 // pred_fallthru
          _
      $region12: #{tpu_custom_call.1} parent=5 // pred_fallthru
        _
      %p258 = scmp.lt.s32.totalorder %s21, 2
      // Predicated region
      $region37: #{tpu_custom_call.1} parent=5 // pred_check
        %p259 = pneg %p258
      $region38: #{tpu_custom_call.1} parent=5 // pred_check_branch
        %261 = sbr.rel (%p259) target = $region40
      $region39: #{tpu_custom_call.1} parent=5 // pred_region
        // Predicated region
        $region41: #{tpu_custom_call.1} parent=39 // pred_check
          %p262 = pneg %p41
        $region42: #{tpu_custom_call.1} parent=39 // pred_check_branch
          %264 = sbr.rel (%p262) target = $region44
        $region43: #{tpu_custom_call.1} parent=39 // pred_region
          %p265 = scmp.lt.s32.totalorder %s21, 1
          %s266 = scalar_select %p265, %s21, 1
          %s267 = smul.addr %s266, 16
          %s268 = smul.addr %s267, 4
          %s269 = scalar_lea.vmem %s0, %s268
        $region44: #{tpu_custom_call.1} parent=39 // pred_fallthru
          _
      $region40: #{tpu_custom_call.1} parent=5 // pred_fallthru
        _
      %p270 = scmp.le.s32.totalorder 1, %s21
      %p271 = scmp.lt.s32.totalorder %s21, 3
      %p272 = pnand %p270, %p271
      %p273 = pneg %p272
      // Predicated region
      $region45: #{tpu_custom_call.1} parent=5 // pred_check
        _
      $region46: #{tpu_custom_call.1} parent=5 // pred_check_branch
        %275 = sbr.rel (%p272) target = $region48
      $region47: #{tpu_custom_call.1} parent=5 // pred_region
        %s276 = ssub.s32 %s21, 1
        %p277 = scmp.lt.s32.totalorder %s26, 1
        %s278 = scalar_select %p277, %s26, 1
        %s279 = smul.addr %s278, 16
        %s280 = smul.addr %s279, 4
        %s281 = scalar_lea.vmem %s0, %s280
        %p282 = pneg %p47
        %p283 = pneg %p44
        %p284 = pneg %p68
        %p285 = pneg %p65
        %p286 = pneg %p89
        %p287 = pneg %p86
        %p288 = pneg %p110
        %p289 = pneg %p107
        %p290 = pneg %p131
        %p291 = pneg %p128
        %p292 = pneg %p152
        %p293 = pneg %p149
        %p294 = pneg %p173
        %p295 = pneg %p170
        %p296 = pneg %p199
        %p297 = pneg %p196
        %s298 = sand.u32 %s186, 1
        %s299 = scalar_lea.sflag [#allocation3], %s298
        %s300 = sand.u32 %s186, 1
        %s301 = smul.addr %s300, 64
        %s302 = scalar_lea.vmem [#allocation2], %s301
        %p303 = pneg %p225
        %p304 = pneg %p222
        %s305 = sand.u32 %s212, 1
        %s306 = scalar_lea.sflag [#allocation5], %s305
        %s307 = sand.u32 %s212, 1
        %s308 = smul.addr %s307, 64
        %s309 = scalar_lea.vmem [#allocation4], %s308
        %p310 = scmp.lt.s32.totalorder %s26, 1
        %s311 = scalar_select %p310, %s26, 1
        %s312 = smul.addr %s311, 16
        %s313 = smul.addr %s312, 4
        %s314 = scalar_lea.vmem %s0, %s313
        %v316 = vld [vmem:[%s314] sm:$0xf]
        %v317 = vld [vmem:[%s314 + $0x4] sm:$0xf]
        %v318 = vld [vmem:[%s314 + $0x8] sm:$0xf]
        %v319 = vld [vmem:[%s314 + $0xc] sm:$0xf]
        %v320 = vld [vmem:[%s314 + $0x10] sm:$0xf]
        %v321 = vld [vmem:[%s314 + $0x14] sm:$0xf]
        %v322 = vld [vmem:[%s314 + $0x18] sm:$0xf]
        %v323 = vld [vmem:[%s314 + $0x1c] sm:$0xf]
        %v324 = vld [vmem:[%s314 + $0x20] sm:$0xf]
        %v325 = vld [vmem:[%s314 + $0x24] sm:$0xf]
        %v326 = vld [vmem:[%s314 + $0x28] sm:$0xf]
        %v327 = vld [vmem:[%s314 + $0x2c] sm:$0xf]
        %v328 = vld [vmem:[%s314 + $0x30] sm:$0xf]
        %v329 = vld [vmem:[%s314 + $0x34] sm:$0xf]
        %v330 = vld [vmem:[%s314 + $0x38] sm:$0xf]
        %v331 = vld [vmem:[%s314 + $0x3c] sm:$0xf]
        %v332 = vld [vmem:[%s1] sm:$0xf]
        %v333 = vld [vmem:[%s1 + $0x4] sm:$0xf]
        %v334 = vld [vmem:[%s1 + $0x8] sm:$0xf]
        %v335 = vld [vmem:[%s1 + $0xc] sm:$0xf]
        %v336 = vld [vmem:[%s2] sm:$0x1]
        %v338 = vlaneseq
        %v339 = vshrl.u32 %v338, 7
        %v340 = vsub.s32 0, %v339
        %v341 = vrot.slane %v336, %v340
        %v359 = vunpack.c.l.b16 %v316
        %v360 = vunpack.c.l.b16 %v317
        %v361 = vunpack.c.l.b16 %v318
        %v362 = vunpack.c.l.b16 %v319
        %v363 = vunpack.c.l.b16 %v320
        %v364 = vunpack.c.l.b16 %v321
        %v365 = vunpack.c.l.b16 %v322
        %v366 = vunpack.c.l.b16 %v323
        %v367 = vunpack.c.l.b16 %v324
        %v368 = vunpack.c.l.b16 %v325
        %v369 = vunpack.c.l.b16 %v326
        %v370 = vunpack.c.l.b16 %v327
        %v371 = vunpack.c.l.b16 %v328
        %v372 = vunpack.c.l.b16 %v329
        %v373 = vunpack.c.l.b16 %v330
        %v374 = vunpack.c.l.b16 %v331
        %v375 = vpack.c.b16 %v360, %v359
        %v376 = vpack.c.b16 %v362, %v361
        %v377 = vpack.c.b16 %v364, %v363
        %v378 = vpack.c.b16 %v366, %v365
        %v379 = vpack.c.b16 %v368, %v367
        %v380 = vpack.c.b16 %v370, %v369
        %v381 = vpack.c.b16 %v372, %v371
        %v382 = vpack.c.b16 %v374, %v373
        %v387 = vunpack.c.l.b16 %v332
        %v388 = vunpack.c.l.b16 %v333
        %v389 = vunpack.c.l.b16 %v334
        %v390 = vunpack.c.l.b16 %v335
        %v391 = vpack.c.b16 %v388, %v387
        %v392 = vpack.c.b16 %v390, %v389
        %vm395 = vcmask 261120
        %v397 = vsel %vm395, %v375, 0
        %v400 = vsel %vm395, %v376, 0
        %v403 = vsel %vm395, %v377, 0
        %v406 = vsel %vm395, %v378, 0
        %v409 = vsel %vm395, %v379, 0
        %v412 = vsel %vm395, %v380, 0
        %v415 = vsel %vm395, %v381, 0
        %v418 = vsel %vm395, %v382, 0
        %420 = vmatprep.subr.bf16.mxu0 0
        %421 = vmatpush1.bf16.msra.mxu0 %v391
        %422 = vmatprep.subr.bf16.mxu0 0
        %423 = vmatpush1.bf16.msra.mxu0 %v392
        %424 = vmatprep.subr.bf16.mxu0 0
        %425 = vmatpush1.bf16.msra.mxu0 0
        %426 = vmatprep.subr.bf16.mxu0 0
        %427 = vmatpush1.bf16.msra.mxu0 0
        %428 = vmatprep.subr.bf16.mxu0 0
        %429 = vmatpush1.bf16.msra.mxu0 0
        %430 = vmatprep.subr.bf16.mxu0 0
        %431 = vmatpush1.bf16.msra.mxu0 0
        %432 = vmatprep.subr.bf16.mxu0 0
        %433 = vmatpush1.bf16.msra.mxu0 0
        %434 = vmatprep.subr.bf16.mxu0 0
        %435 = vmatpush1.bf16.msra.mxu0 0
        %436 = vmatprep.subr.bf16.mxu0 0
        %437 = vmatpush1.bf16.msra.mxu0 0
        %438 = vmatprep.subr.bf16.mxu0 0
        %439 = vmatpush1.bf16.msra.mxu0 0
        %440 = vmatprep.subr.bf16.mxu0 0
        %441 = vmatpush1.bf16.msra.mxu0 0
        %442 = vmatprep.subr.bf16.mxu0 0
        %443 = vmatpush1.bf16.msra.mxu0 0
        %444 = vmatprep.subr.bf16.mxu0 0
        %445 = vmatpush1.bf16.msra.mxu0 0
        %446 = vmatprep.subr.bf16.mxu0 0
        %447 = vmatpush1.bf16.msra.mxu0 0
        %448 = vmatprep.subr.bf16.mxu0 0
        %449 = vmatpush1.bf16.msra.mxu0 0
        %450 = vmatprep.subr.bf16.mxu0 0
        %451 = vmatpush1.bf16.msra.mxu0 0
        %452 = vmatprep.mubr.bf16.mxu0 0
        %453 = vmatmul.mubr.bf16.gmra.mrb[0].mxu0 %v397
        %v454 = vpop.f32.mrb[0].mxu0
        %v455 = vadd.f32 %v341, %v454
        %v456 = vpop.f32.mrb[0].mxu0
        %v457 = vpop.f32.mrb[0].mxu0
        %v458 = vadd.f32 %v341, %v457
        %v459 = vpop.f32.mrb[0].mxu0
        %460 = vmatprep.mubr.bf16.mxu0 0
        %461 = vmatmul.mubr.bf16.gmra.mrb[0].mxu0 %v400
        %v462 = vpop.f32.mrb[0].mxu0
        %v463 = vadd.f32 %v341, %v462
        %v464 = vpop.f32.mrb[0].mxu0
        %v465 = vpop.f32.mrb[0].mxu0
        %v466 = vadd.f32 %v341, %v465
        %v467 = vpop.f32.mrb[0].mxu0
        %468 = vmatprep.mubr.bf16.mxu0 0
        %469 = vmatmul.mubr.bf16.gmra.mrb[0].mxu0 %v403
        %v470 = vpop.f32.mrb[0].mxu0
        %v471 = vadd.f32 %v341, %v470
        %v472 = vpop.f32.mrb[0].mxu0
        %v473 = vpop.f32.mrb[0].mxu0
        %v474 = vadd.f32 %v341, %v473
        %v475 = vpop.f32.mrb[0].mxu0
        %476 = vmatprep.mubr.bf16.mxu0 0
        %477 = vmatmul.mubr.bf16.gmra.mrb[0].mxu0 %v406
        %v478 = vpop.f32.mrb[0].mxu0
        %v479 = vadd.f32 %v341, %v478
        %v480 = vpop.f32.mrb[0].mxu0
        %v481 = vpop.f32.mrb[0].mxu0
        %v482 = vadd.f32 %v341, %v481
        %v483 = vpop.f32.mrb[0].mxu0
        %484 = vmatprep.mubr.bf16.mxu0 0
        %485 = vmatmul.mubr.bf16.gmra.mrb[0].mxu0 %v409
        %v486 = vpop.f32.mrb[0].mxu0
        %v487 = vadd.f32 %v341, %v486
        %v488 = vpop.f32.mrb[0].mxu0
        %v489 = vpop.f32.mrb[0].mxu0
        %v490 = vadd.f32 %v341, %v489
        %v491 = vpop.f32.mrb[0].mxu0
        %492 = vmatprep.mubr.bf16.mxu0 0
        %493 = vmatmul.mubr.bf16.gmra.mrb[0].mxu0 %v412
        %v494 = vpop.f32.mrb[0].mxu0
        %v495 = vadd.f32 %v341, %v494
        %v496 = vpop.f32.mrb[0].mxu0
        %v497 = vpop.f32.mrb[0].mxu0
        %v498 = vadd.f32 %v341, %v497
        %v499 = vpop.f32.mrb[0].mxu0
        %500 = vmatprep.mubr.bf16.mxu0 0
        %501 = vmatmul.mubr.bf16.gmra.mrb[0].mxu0 %v415
        %v502 = vpop.f32.mrb[0].mxu0
        %v503 = vadd.f32 %v341, %v502
        %v504 = vpop.f32.mrb[0].mxu0
        %v505 = vpop.f32.mrb[0].mxu0
        %v506 = vadd.f32 %v341, %v505
        %v507 = vpop.f32.mrb[0].mxu0
        %508 = vmatprep.mubr.bf16.mxu0 0
        %509 = vmatmul.mubr.bf16.gmra.mrb[0].mxu0 %v418
        %v510 = vpop.f32.mrb[0].mxu0
        %v511 = vadd.f32 %v341, %v510
        %v512 = vpop.f32.mrb[0].mxu0
        %v513 = vpop.f32.mrb[0].mxu0
        %v514 = vadd.f32 %v341, %v513
        %v515 = vpop.f32.mrb[0].mxu0
        %516 = vdwg.mxu0
        %v517 = vmax.f32 %v455, 0.0
        %v518 = vmax.f32 %v458, 0.0
        %v519 = vmax.f32 %v463, 0.0
        %v520 = vmax.f32 %v466, 0.0
        %v521 = vmax.f32 %v471, 0.0
        %v522 = vmax.f32 %v474, 0.0
        %v523 = vmax.f32 %v479, 0.0
        %v524 = vmax.f32 %v482, 0.0
        %v525 = vmax.f32 %v487, 0.0
        %v526 = vmax.f32 %v490, 0.0
        %v527 = vmax.f32 %v495, 0.0
        %v528 = vmax.f32 %v498, 0.0
        %v529 = vmax.f32 %v503, 0.0
        %v530 = vmax.f32 %v506, 0.0
        %v531 = vmax.f32 %v511, 0.0
        %v532 = vmax.f32 %v514, 0.0
        %v533 = vpack.c.bf16 %v518, %v517
        %v534 = vpack.c.bf16 %v520, %v519
        %v535 = vpack.c.bf16 %v522, %v521
        %v536 = vpack.c.bf16 %v524, %v523
        %v537 = vpack.c.bf16 %v526, %v525
        %v538 = vpack.c.bf16 %v528, %v527
        %v539 = vpack.c.bf16 %v530, %v529
        %v540 = vpack.c.bf16 %v532, %v531
        %v541 = vld [vmem:[%s3] sm:$0xf]
        %v542 = vld [vmem:[%s3 + $0x4] sm:$0xf]
        %v543 = vld [vmem:[%s3 + $0x8] sm:$0xf]
        %v544 = vld [vmem:[%s3 + $0xc] sm:$0xf]
        %v545 = vld [vmem:[%s3 + $0x10] sm:$0xf]
        %v546 = vld [vmem:[%s3 + $0x14] sm:$0xf]
        %v547 = vld [vmem:[%s3 + $0x18] sm:$0xf]
        %v548 = vld [vmem:[%s3 + $0x1c] sm:$0xf]
        %v549 = vld [vmem:[%s3 + $0x20] sm:$0xf]
        %v550 = vld [vmem:[%s3 + $0x24] sm:$0xf]
        %v551 = vld [vmem:[%s3 + $0x28] sm:$0xf]
        %v552 = vld [vmem:[%s3 + $0x2c] sm:$0xf]
        %v553 = vld [vmem:[%s3 + $0x30] sm:$0xf]
        %v554 = vld [vmem:[%s3 + $0x34] sm:$0xf]
        %v555 = vld [vmem:[%s3 + $0x38] sm:$0xf]
        %v556 = vld [vmem:[%s3 + $0x3c] sm:$0xf]
        %v557 = vld [vmem:[%s4] sm:$0x1]
        %v559 = vlaneseq
        %v560 = vshrl.u32 %v559, 7
        %v561 = vsub.s32 0, %v560
        %v562 = vrot.slane %v557, %v561
        %v580 = vunpack.c.l.b16 %v541
        %v581 = vunpack.c.l.b16 %v542
        %v582 = vunpack.c.l.b16 %v543
        %v583 = vunpack.c.l.b16 %v544
        %v584 = vunpack.c.l.b16 %v545
        %v585 = vunpack.c.l.b16 %v546
        %v586 = vunpack.c.l.b16 %v547
        %v587 = vunpack.c.l.b16 %v548
        %v588 = vunpack.c.l.b16 %v549
        %v589 = vunpack.c.l.b16 %v550
        %v590 = vunpack.c.l.b16 %v551
        %v591 = vunpack.c.l.b16 %v552
        %v592 = vunpack.c.l.b16 %v553
        %v593 = vunpack.c.l.b16 %v554
        %v594 = vunpack.c.l.b16 %v555
        %v595 = vunpack.c.l.b16 %v556
        %v596 = vpack.c.b16 %v581, %v580
        %v597 = vpack.c.b16 %v583, %v582
        %v598 = vpack.c.b16 %v585, %v584
        %v599 = vpack.c.b16 %v587, %v586
        %v600 = vpack.c.b16 %v589, %v588
        %v601 = vpack.c.b16 %v591, %v590
        %v602 = vpack.c.b16 %v593, %v592
        %v603 = vpack.c.b16 %v595, %v594
        %612 = vmatprep.subr.bf16.mxu0 0
        %613 = vmatpush1.bf16.msra.mxu0 %v596
        %614 = vmatprep.subr.bf16.mxu0 0
        %615 = vmatpush1.bf16.msra.mxu0 %v597
        %616 = vmatprep.subr.bf16.mxu0 0
        %617 = vmatpush1.bf16.msra.mxu0 %v598
        %618 = vmatprep.subr.bf16.mxu0 0
        %619 = vmatpush1.bf16.msra.mxu0 %v599
        %620 = vmatprep.subr.bf16.mxu0 0
        %621 = vmatpush1.bf16.msra.mxu0 %v600
        %622 = vmatprep.subr.bf16.mxu0 0
        %623 = vmatpush1.bf16.msra.mxu0 %v601
        %624 = vmatprep.subr.bf16.mxu0 0
        %625 = vmatpush1.bf16.msra.mxu0 %v602
        %626 = vmatprep.subr.bf16.mxu0 0
        %627 = vmatpush1.bf16.msra.mxu0 %v603
        %628 = vmatprep.subr.bf16.mxu0 0
        %629 = vmatpush1.bf16.msra.mxu0 0
        %630 = vmatprep.subr.bf16.mxu0 0
        %631 = vmatpush1.bf16.msra.mxu0 0
        %632 = vmatprep.subr.bf16.mxu0 0
        %633 = vmatpush1.bf16.msra.mxu0 0
        %634 = vmatprep.subr.bf16.mxu0 0
        %635 = vmatpush1.bf16.msra.mxu0 0
        %636 = vmatprep.subr.bf16.mxu0 0
        %637 = vmatpush1.bf16.msra.mxu0 0
        %638 = vmatprep.subr.bf16.mxu0 0
        %639 = vmatpush1.bf16.msra.mxu0 0
        %640 = vmatprep.subr.bf16.mxu0 0
        %641 = vmatpush1.bf16.msra.mxu0 0
        %642 = vmatprep.subr.bf16.mxu0 0
        %643 = vmatpush1.bf16.msra.mxu0 0
        %644 = vmatprep.mubr.bf16.mxu0 0
        %645 = vmatmul.mubr.bf16.gmra.mrb[0].mxu0 %v533
        %v646 = vpop.f32.mrb[0].mxu0
        %v647 = vadd.f32 %v562, %v646
        %v648 = vpop.f32.mrb[0].mxu0
        %v649 = vpop.f32.mrb[0].mxu0
        %v650 = vadd.f32 %v562, %v649
        %v651 = vpop.f32.mrb[0].mxu0
        %652 = vmatprep.mubr.bf16.mxu0 0
        %653 = vmatmul.mubr.bf16.gmra.mrb[0].mxu0 %v534
        %v654 = vpop.f32.mrb[0].mxu0
        %v655 = vadd.f32 %v562, %v654
        %v656 = vpop.f32.mrb[0].mxu0
        %v657 = vpop.f32.mrb[0].mxu0
        %v658 = vadd.f32 %v562, %v657
        %v659 = vpop.f32.mrb[0].mxu0
        %660 = vmatprep.mubr.bf16.mxu0 0
        %661 = vmatmul.mubr.bf16.gmra.mrb[0].mxu0 %v535
        %v662 = vpop.f32.mrb[0].mxu0
        %v663 = vadd.f32 %v562, %v662
        %v664 = vpop.f32.mrb[0].mxu0
        %v665 = vpop.f32.mrb[0].mxu0
        %v666 = vadd.f32 %v562, %v665
        %v667 = vpop.f32.mrb[0].mxu0
        %668 = vmatprep.mubr.bf16.mxu0 0
        %669 = vmatmul.mubr.bf16.gmra.mrb[0].mxu0 %v536
        %v670 = vpop.f32.mrb[0].mxu0
        %v671 = vadd.f32 %v562, %v670
        %v672 = vpop.f32.mrb[0].mxu0
        %v673 = vpop.f32.mrb[0].mxu0
        %v674 = vadd.f32 %v562, %v673
        %v675 = vpop.f32.mrb[0].mxu0
        %676 = vmatprep.mubr.bf16.mxu0 0
        %677 = vmatmul.mubr.bf16.gmra.mrb[0].mxu0 %v537
        %v678 = vpop.f32.mrb[0].mxu0
        %v679 = vadd.f32 %v562, %v678
        %v680 = vpop.f32.mrb[0].mxu0
        %v681 = vpop.f32.mrb[0].mxu0
        %v682 = vadd.f32 %v562, %v681
        %v683 = vpop.f32.mrb[0].mxu0
        %684 = vmatprep.mubr.bf16.mxu0 0
        %685 = vmatmul.mubr.bf16.gmra.mrb[0].mxu0 %v538
        %v686 = vpop.f32.mrb[0].mxu0
        %v687 = vadd.f32 %v562, %v686
        %v688 = vpop.f32.mrb[0].mxu0
        %v689 = vpop.f32.mrb[0].mxu0
        %v690 = vadd.f32 %v562, %v689
        %v691 = vpop.f32.mrb[0].mxu0
        %692 = vmatprep.mubr.bf16.mxu0 0
        %693 = vmatmul.mubr.bf16.gmra.mrb[0].mxu0 %v539
        %v694 = vpop.f32.mrb[0].mxu0
        %v695 = vadd.f32 %v562, %v694
        %v696 = vpop.f32.mrb[0].mxu0
        %v697 = vpop.f32.mrb[0].mxu0
        %v698 = vadd.f32 %v562, %v697
        %v699 = vpop.f32.mrb[0].mxu0
        %700 = vmatprep.mubr.bf16.mxu0 0
        %701 = vmatmul.mubr.bf16.gmra.mrb[0].mxu0 %v540
        %v702 = vpop.f32.mrb[0].mxu0
        %v703 = vadd.f32 %v562, %v702
        %v704 = vpop.f32.mrb[0].mxu0
        %v705 = vpop.f32.mrb[0].mxu0
        %v706 = vadd.f32 %v562, %v705
        %v707 = vpop.f32.mrb[0].mxu0
        %708 = vdwg.mxu0
        %v709 = vmax.f32 %v647, 0.0
        %v710 = vmax.f32 %v650, 0.0
        %v711 = vmax.f32 %v655, 0.0
        %v712 = vmax.f32 %v658, 0.0
        %v713 = vmax.f32 %v663, 0.0
        %v714 = vmax.f32 %v666, 0.0
        %v715 = vmax.f32 %v671, 0.0
        %v716 = vmax.f32 %v674, 0.0
        %v717 = vmax.f32 %v679, 0.0
        %v718 = vmax.f32 %v682, 0.0
        %v719 = vmax.f32 %v687, 0.0
        %v720 = vmax.f32 %v690, 0.0
        %v721 = vmax.f32 %v695, 0.0
        %v722 = vmax.f32 %v698, 0.0
        %v723 = vmax.f32 %v703, 0.0
        %v724 = vmax.f32 %v706, 0.0
        %v725 = vld [vmem:[%s5] sm:$0xf]
        %v726 = vld [vmem:[%s5 + $0x4] sm:$0xf]
        %v727 = vld [vmem:[%s5 + $0x8] sm:$0xf]
        %v728 = vld [vmem:[%s5 + $0xc] sm:$0xf]
        %v729 = vld [vmem:[%s6] sm:$0x1]
        %v731 = vlaneseq
        %v732 = vshrl.u32 %v731, 7
        %v733 = vsub.s32 0, %v732
        %v734 = vrot.slane %v729, %v733
        %v740 = vunpack.c.l.b16 %v725
        %v741 = vunpack.c.l.b16 %v726
        %v742 = vunpack.c.l.b16 %v727
        %v743 = vunpack.c.l.b16 %v728
        %v744 = vpack.c.b16 %v741, %v740
        %v745 = vpack.c.b16 %v743, %v742
        %748 = vmatprep.subr.bf16.mxu0 0
        %749 = vmatpush1.bf16.msra.mxu0 %v744
        %750 = vmatprep.subr.bf16.mxu0 0
        %751 = vmatpush1.bf16.msra.mxu0 %v745
        %752 = vmatprep.subr.bf16.mxu0 0
        %753 = vmatpush1.bf16.msra.mxu0 0
        %754 = vmatprep.subr.bf16.mxu0 0
        %755 = vmatpush1.bf16.msra.mxu0 0
        %756 = vmatprep.subr.bf16.mxu0 0
        %757 = vmatpush1.bf16.msra.mxu0 0
        %758 = vmatprep.subr.bf16.mxu0 0
        %759 = vmatpush1.bf16.msra.mxu0 0
        %760 = vmatprep.subr.bf16.mxu0 0
        %761 = vmatpush1.bf16.msra.mxu0 0
        %762 = vmatprep.subr.bf16.mxu0 0
        %763 = vmatpush1.bf16.msra.mxu0 0
        %764 = vmatprep.subr.bf16.mxu0 0
        %765 = vmatpush1.bf16.msra.mxu0 0
        %766 = vmatprep.subr.bf16.mxu0 0
        %767 = vmatpush1.bf16.msra.mxu0 0
        %768 = vmatprep.subr.bf16.mxu0 0
        %769 = vmatpush1.bf16.msra.mxu0 0
        %770 = vmatprep.subr.bf16.mxu0 0
        %771 = vmatpush1.bf16.msra.mxu0 0
        %772 = vmatprep.subr.bf16.mxu0 0
        %773 = vmatpush1.bf16.msra.mxu0 0
        %774 = vmatprep.subr.bf16.mxu0 0
        %775 = vmatpush1.bf16.msra.mxu0 0
        %776 = vmatprep.subr.bf16.mxu0 0
        %777 = vmatpush1.bf16.msra.mxu0 0
        %778 = vmatprep.subr.bf16.mxu0 0
        %779 = vmatpush1.bf16.msra.mxu0 0
        %780 = vmatprep.mubr.bf16.mxu0 0
        %781 = vmatmul.mubr.bf16.gmra.mrb[0].mxu0 %v397
        %v782 = vpop.f32.mrb[0].mxu0
        %v783 = vadd.f32 %v734, %v782
        %v784 = vpop.f32.mrb[0].mxu0
        %v785 = vpop.f32.mrb[0].mxu0
        %v786 = vadd.f32 %v734, %v785
        %v787 = vpop.f32.mrb[0].mxu0
        %788 = vmatprep.mubr.bf16.mxu0 0
        %789 = vmatmul.mubr.bf16.gmra.mrb[0].mxu0 %v400
        %v790 = vpop.f32.mrb[0].mxu0
        %v791 = vadd.f32 %v734, %v790
        %v792 = vpop.f32.mrb[0].mxu0
        %v793 = vpop.f32.mrb[0].mxu0
        %v794 = vadd.f32 %v734, %v793
        %v795 = vpop.f32.mrb[0].mxu0
        %796 = vmatprep.mubr.bf16.mxu0 0
        %797 = vmatmul.mubr.bf16.gmra.mrb[0].mxu0 %v403
        %v798 = vpop.f32.mrb[0].mxu0
        %v799 = vadd.f32 %v734, %v798
        %v800 = vpop.f32.mrb[0].mxu0
        %v801 = vpop.f32.mrb[0].mxu0
        %v802 = vadd.f32 %v734, %v801
        %v803 = vpop.f32.mrb[0].mxu0
        %804 = vmatprep.mubr.bf16.mxu0 0
        %805 = vmatmul.mubr.bf16.gmra.mrb[0].mxu0 %v406
        %v806 = vpop.f32.mrb[0].mxu0
        %v807 = vadd.f32 %v734, %v806
        %v808 = vpop.f32.mrb[0].mxu0
        %v809 = vpop.f32.mrb[0].mxu0
        %v810 = vadd.f32 %v734, %v809
        %v811 = vpop.f32.mrb[0].mxu0
        %812 = vmatprep.mubr.bf16.mxu0 0
        %813 = vmatmul.mubr.bf16.gmra.mrb[0].mxu0 %v409
        %v814 = vpop.f32.mrb[0].mxu0
        %v815 = vadd.f32 %v734, %v814
        %v816 = vpop.f32.mrb[0].mxu0
        %v817 = vpop.f32.mrb[0].mxu0
        %v818 = vadd.f32 %v734, %v817
        %v819 = vpop.f32.mrb[0].mxu0
        %820 = vmatprep.mubr.bf16.mxu0 0
        %821 = vmatmul.mubr.bf16.gmra.mrb[0].mxu0 %v412
        %v822 = vpop.f32.mrb[0].mxu0
        %v823 = vadd.f32 %v734, %v822
        %v824 = vpop.f32.mrb[0].mxu0
        %v825 = vpop.f32.mrb[0].mxu0
        %v826 = vadd.f32 %v734, %v825
        %v827 = vpop.f32.mrb[0].mxu0
        %828 = vmatprep.mubr.bf16.mxu0 0
        %829 = vmatmul.mubr.bf16.gmra.mrb[0].mxu0 %v415
        %v830 = vpop.f32.mrb[0].mxu0
        %v831 = vadd.f32 %v734, %v830
        %v832 = vpop.f32.mrb[0].mxu0
        %v833 = vpop.f32.mrb[0].mxu0
        %v834 = vadd.f32 %v734, %v833
        %v835 = vpop.f32.mrb[0].mxu0
        %836 = vmatprep.mubr.bf16.mxu0 0
        %837 = vmatmul.mubr.bf16.gmra.mrb[0].mxu0 %v418
        %v838 = vpop.f32.mrb[0].mxu0
        %v839 = vadd.f32 %v734, %v838
        %v840 = vpop.f32.mrb[0].mxu0
        %v841 = vpop.f32.mrb[0].mxu0
        %v842 = vadd.f32 %v734, %v841
        %v843 = vpop.f32.mrb[0].mxu0
        %844 = vdwg.mxu0
        %v845 = vmax.f32 %v783, 0.0
        %v846 = vmax.f32 %v786, 0.0
        %v847 = vmax.f32 %v791, 0.0
        %v848 = vmax.f32 %v794, 0.0
        %v849 = vmax.f32 %v799, 0.0
        %v850 = vmax.f32 %v802, 0.0
        %v851 = vmax.f32 %v807, 0.0
        %v852 = vmax.f32 %v810, 0.0
        %v853 = vmax.f32 %v815, 0.0
        %v854 = vmax.f32 %v818, 0.0
        %v855 = vmax.f32 %v823, 0.0
        %v856 = vmax.f32 %v826, 0.0
        %v857 = vmax.f32 %v831, 0.0
        %v858 = vmax.f32 %v834, 0.0
        %v859 = vmax.f32 %v839, 0.0
        %v860 = vmax.f32 %v842, 0.0
        %v861 = vlaneseq
        %v862 = vshrl.u32 %v861, 7
        %v863 = vadd.s32 %v862, 8
        %v864 = vadd.s32 %v862, 16
        %v865 = vadd.s32 %v862, 24
        %v866 = vadd.s32 %v862, 32
        %v867 = vadd.s32 %v862, 40
        %v868 = vadd.s32 %v862, 48
        %v869 = vadd.s32 %v862, 56
        %v870 = vadd.s32 %v862, 64
        %v871 = vadd.s32 %v862, 72
        %v872 = vadd.s32 %v862, 80
        %v873 = vadd.s32 %v862, 88
        %v874 = vadd.s32 %v862, 96
        %v875 = vadd.s32 %v862, 104
        %v876 = vadd.s32 %v862, 112
        %v877 = vadd.s32 %v862, 120
        %vm878 = vcmp.lt.s32.totalorder %v862, 8
        %vm879 = vcmp.lt.s32.totalorder %v863, 8
        %vm880 = vcmp.lt.s32.totalorder %v864, 8
        %vm881 = vcmp.lt.s32.totalorder %v865, 8
        %vm882 = vcmp.lt.s32.totalorder %v866, 8
        %vm883 = vcmp.lt.s32.totalorder %v867, 8
        %vm884 = vcmp.lt.s32.totalorder %v868, 8
        %vm885 = vcmp.lt.s32.totalorder %v869, 8
        %vm886 = vcmp.lt.s32.totalorder %v870, 8
        %vm887 = vcmp.lt.s32.totalorder %v871, 8
        %vm888 = vcmp.lt.s32.totalorder %v872, 8
        %vm889 = vcmp.lt.s32.totalorder %v873, 8
        %vm890 = vcmp.lt.s32.totalorder %v874, 8
        %vm891 = vcmp.lt.s32.totalorder %v875, 8
        %vm892 = vcmp.lt.s32.totalorder %v876, 8
        %vm893 = vcmp.lt.s32.totalorder %v877, 8
        %v894 = vsel %vm878, 1, 0
        %v895 = vsel %vm879, 1, 0
        %v896 = vsel %vm880, 1, 0
        %v897 = vsel %vm881, 1, 0
        %v898 = vsel %vm882, 1, 0
        %v899 = vsel %vm883, 1, 0
        %v900 = vsel %vm884, 1, 0
        %v901 = vsel %vm885, 1, 0
        %v902 = vsel %vm886, 1, 0
        %v903 = vsel %vm887, 1, 0
        %v904 = vsel %vm888, 1, 0
        %v905 = vsel %vm889, 1, 0
        %v906 = vsel %vm890, 1, 0
        %v907 = vsel %vm891, 1, 0
        %v908 = vsel %vm892, 1, 0
        %v909 = vsel %vm893, 1, 0
        %v910 = vcvt.s32.f32 %v894
        %v911 = vcvt.s32.f32 %v895
        %v912 = vcvt.s32.f32 %v896
        %v913 = vcvt.s32.f32 %v897
        %v914 = vcvt.s32.f32 %v898
        %v915 = vcvt.s32.f32 %v899
        %v916 = vcvt.s32.f32 %v900
        %v917 = vcvt.s32.f32 %v901
        %v918 = vcvt.s32.f32 %v902
        %v919 = vcvt.s32.f32 %v903
        %v920 = vcvt.s32.f32 %v904
        %v921 = vcvt.s32.f32 %v905
        %v922 = vcvt.s32.f32 %v906
        %v923 = vcvt.s32.f32 %v907
        %v924 = vcvt.s32.f32 %v908
        %v925 = vcvt.s32.f32 %v909
        %v926 = vmul.f32 %v709, %v910
        %v927 = vmul.f32 %v710, %v911
        %v928 = vmul.f32 %v711, %v912
        %v929 = vmul.f32 %v712, %v913
        %v930 = vmul.f32 %v713, %v914
        %v931 = vmul.f32 %v714, %v915
        %v932 = vmul.f32 %v715, %v916
        %v933 = vmul.f32 %v716, %v917
        %v934 = vmul.f32 %v717, %v918
        %v935 = vmul.f32 %v718, %v919
        %v936 = vmul.f32 %v719, %v920
        %v937 = vmul.f32 %v720, %v921
        %v938 = vmul.f32 %v721, %v922
        %v939 = vmul.f32 %v722, %v923
        %v940 = vmul.f32 %v723, %v924
        %v941 = vmul.f32 %v724, %v925
        %v942 = vmul.f32 %v845, %v910
        %v943 = vmul.f32 %v846, %v911
        %v944 = vmul.f32 %v847, %v912
        %v945 = vmul.f32 %v848, %v913
        %v946 = vmul.f32 %v849, %v914
        %v947 = vmul.f32 %v850, %v915
        %v948 = vmul.f32 %v851, %v916
        %v949 = vmul.f32 %v852, %v917
        %v950 = vmul.f32 %v853, %v918
        %v951 = vmul.f32 %v854, %v919
        %v952 = vmul.f32 %v855, %v920
        %v953 = vmul.f32 %v856, %v921
        %v954 = vmul.f32 %v857, %v922
        %v955 = vmul.f32 %v858, %v923
        %v956 = vmul.f32 %v859, %v924
        %v957 = vmul.f32 %v860, %v925
        %958 = vxpose.xlu0.b32.start [1/16] %v926, 128
        %959 = vxpose.xlu0.b32.cont [2/16] %v927, 128
        %960 = vxpose.xlu0.b32.cont [3/16] %v928, 128
        %961 = vxpose.xlu0.b32.cont [4/16] %v929, 128
        %962 = vxpose.xlu0.b32.cont [5/16] %v930, 128
        %963 = vxpose.xlu0.b32.cont [6/16] %v931, 128
        %964 = vxpose.xlu0.b32.cont [7/16] %v932, 128
        %965 = vxpose.xlu0.b32.cont [8/16] %v933, 128
        %966 = vxpose.xlu0.b32.cont [9/16] %v934, 128
        %967 = vxpose.xlu0.b32.cont [10/16] %v935, 128
        %968 = vxpose.xlu0.b32.cont [11/16] %v936, 128
        %969 = vxpose.xlu0.b32.cont [12/16] %v937, 128
        %970 = vxpose.xlu0.b32.cont [13/16] %v938, 128
        %971 = vxpose.xlu0.b32.cont [14/16] %v939, 128
        %972 = vxpose.xlu0.b32.cont [15/16] %v940, 128
        %973 = vxpose.xlu0.b32.end [16/16] %v941, 128
        %v974 = vpop.trf.xlu0
        %v975 = vpop.trf.xlu0
        %v976 = vpop.trf.xlu0
        %v977 = vpop.trf.xlu0
        %v978 = vpop.trf.xlu0
        %v979 = vpop.trf.xlu0
        %v980 = vpop.trf.xlu0
        %v981 = vpop.trf.xlu0
        %v982 = vpop.trf.xlu0
        %v983 = vpop.trf.xlu0
        %v984 = vpop.trf.xlu0
        %v985 = vpop.trf.xlu0
        %v986 = vpop.trf.xlu0
        %v987 = vpop.trf.xlu0
        %v988 = vpop.trf.xlu0
        %v989 = vpop.trf.xlu0
        %v990 = vpack.c.bf16 %v975, %v974
        %v991 = vpack.c.bf16 %v977, %v976
        %v992 = vpack.c.bf16 %v979, %v978
        %v993 = vpack.c.bf16 %v981, %v980
        %v994 = vpack.c.bf16 %v983, %v982
        %v995 = vpack.c.bf16 %v985, %v984
        %v996 = vpack.c.bf16 %v987, %v986
        %v997 = vpack.c.bf16 %v989, %v988
        %v1006 = vunpack.c.l.b16 %v990
        %v1007 = vunpack.c.h.b16 %v990
        %v1008 = vunpack.c.l.b16 %v991
        %v1009 = vunpack.c.h.b16 %v991
        %v1010 = vunpack.c.l.b16 %v992
        %v1011 = vunpack.c.h.b16 %v992
        %v1012 = vunpack.c.l.b16 %v993
        %v1013 = vunpack.c.h.b16 %v993
        %v1014 = vunpack.c.l.b16 %v994
        %v1015 = vunpack.c.h.b16 %v994
        %v1016 = vunpack.c.l.b16 %v995
        %v1017 = vunpack.c.h.b16 %v995
        %v1018 = vunpack.c.l.b16 %v996
        %v1019 = vunpack.c.h.b16 %v996
        %v1020 = vunpack.c.l.b16 %v997
        %v1021 = vunpack.c.h.b16 %v997
        %v1022 = vpack.c.b16 %v1006, %v1006
        %v1023 = vpack.c.b16 %v1007, %v1007
        %v1024 = vpack.c.b16 %v1008, %v1008
        %v1025 = vpack.c.b16 %v1009, %v1009
        %v1026 = vpack.c.b16 %v1010, %v1010
        %v1027 = vpack.c.b16 %v1011, %v1011
        %v1028 = vpack.c.b16 %v1012, %v1012
        %v1029 = vpack.c.b16 %v1013, %v1013
        %v1030 = vpack.c.b16 %v1014, %v1014
        %v1031 = vpack.c.b16 %v1015, %v1015
        %v1032 = vpack.c.b16 %v1016, %v1016
        %v1033 = vpack.c.b16 %v1017, %v1017
        %v1034 = vpack.c.b16 %v1018, %v1018
        %v1035 = vpack.c.b16 %v1019, %v1019
        %v1036 = vpack.c.b16 %v1020, %v1020
        %v1037 = vpack.c.b16 %v1021, %v1021
        %1054 = vst [vmem:[%s302] sm:$0xf] %v1022
        %1055 = vst [vmem:[%s302 + $0x4] sm:$0xf] %v1023
        %1056 = vst [vmem:[%s302 + $0x8] sm:$0xf] %v1024
        %1057 = vst [vmem:[%s302 + $0xc] sm:$0xf] %v1025
        %1058 = vst [vmem:[%s302 + $0x10] sm:$0xf] %v1026
        %1059 = vst [vmem:[%s302 + $0x14] sm:$0xf] %v1027
        %1060 = vst [vmem:[%s302 + $0x18] sm:$0xf] %v1028
        %1061 = vst [vmem:[%s302 + $0x1c] sm:$0xf] %v1029
        %1062 = vst [vmem:[%s302 + $0x20] sm:$0xf] %v1030
        %1063 = vst [vmem:[%s302 + $0x24] sm:$0xf] %v1031
        %1064 = vst [vmem:[%s302 + $0x28] sm:$0xf] %v1032
        %1065 = vst [vmem:[%s302 + $0x2c] sm:$0xf] %v1033
        %1066 = vst [vmem:[%s302 + $0x30] sm:$0xf] %v1034
        %1067 = vst [vmem:[%s302 + $0x34] sm:$0xf] %v1035
        %1068 = vst [vmem:[%s302 + $0x38] sm:$0xf] %v1036
        %1069 = vst [vmem:[%s302 + $0x3c] sm:$0xf] %v1037
        %v1070 = vpack.c.bf16 %v943, %v942
        %v1071 = vpack.c.bf16 %v945, %v944
        %v1072 = vpack.c.bf16 %v947, %v946
        %v1073 = vpack.c.bf16 %v949, %v948
        %v1074 = vpack.c.bf16 %v951, %v950
        %v1075 = vpack.c.bf16 %v953, %v952
        %v1076 = vpack.c.bf16 %v955, %v954
        %v1077 = vpack.c.bf16 %v957, %v956
        %v1086 = vunpack.c.l.b16 %v1070
        %v1087 = vunpack.c.h.b16 %v1070
        %v1088 = vunpack.c.l.b16 %v1071
        %v1089 = vunpack.c.h.b16 %v1071
        %v1090 = vunpack.c.l.b16 %v1072
        %v1091 = vunpack.c.h.b16 %v1072
        %v1092 = vunpack.c.l.b16 %v1073
        %v1093 = vunpack.c.h.b16 %v1073
        %v1094 = vunpack.c.l.b16 %v1074
        %v1095 = vunpack.c.h.b16 %v1074
        %v1096 = vunpack.c.l.b16 %v1075
        %v1097 = vunpack.c.h.b16 %v1075
        %v1098 = vunpack.c.l.b16 %v1076
        %v1099 = vunpack.c.h.b16 %v1076
        %v1100 = vunpack.c.l.b16 %v1077
        %v1101 = vunpack.c.h.b16 %v1077
        %v1102 = vpack.c.b16 %v1086, %v1086
        %v1103 = vpack.c.b16 %v1087, %v1087
        %v1104 = vpack.c.b16 %v1088, %v1088
        %v1105 = vpack.c.b16 %v1089, %v1089
        %v1106 = vpack.c.b16 %v1090, %v1090
        %v1107 = vpack.c.b16 %v1091, %v1091
        %v1108 = vpack.c.b16 %v1092, %v1092
        %v1109 = vpack.c.b16 %v1093, %v1093
        %v1110 = vpack.c.b16 %v1094, %v1094
        %v1111 = vpack.c.b16 %v1095, %v1095
        %v1112 = vpack.c.b16 %v1096, %v1096
        %v1113 = vpack.c.b16 %v1097, %v1097
        %v1114 = vpack.c.b16 %v1098, %v1098
        %v1115 = vpack.c.b16 %v1099, %v1099
        %v1116 = vpack.c.b16 %v1100, %v1100
        %v1117 = vpack.c.b16 %v1101, %v1101
        %1134 = vst [vmem:[%s309] sm:$0xf] %v1102
        %1135 = vst [vmem:[%s309 + $0x4] sm:$0xf] %v1103
        %1136 = vst [vmem:[%s309 + $0x8] sm:$0xf] %v1104
        %1137 = vst [vmem:[%s309 + $0xc] sm:$0xf] %v1105
        %1138 = vst [vmem:[%s309 + $0x10] sm:$0xf] %v1106
        %1139 = vst [vmem:[%s309 + $0x14] sm:$0xf] %v1107
        %1140 = vst [vmem:[%s309 + $0x18] sm:$0xf] %v1108
        %1141 = vst [vmem:[%s309 + $0x1c] sm:$0xf] %v1109
        %1142 = vst [vmem:[%s309 + $0x20] sm:$0xf] %v1110
        %1143 = vst [vmem:[%s309 + $0x24] sm:$0xf] %v1111
        %1144 = vst [vmem:[%s309 + $0x28] sm:$0xf] %v1112
        %1145 = vst [vmem:[%s309 + $0x2c] sm:$0xf] %v1113
        %1146 = vst [vmem:[%s309 + $0x30] sm:$0xf] %v1114
        %1147 = vst [vmem:[%s309 + $0x34] sm:$0xf] %v1115
        %1148 = vst [vmem:[%s309 + $0x38] sm:$0xf] %v1116
        %1149 = vst [vmem:[%s309 + $0x3c] sm:$0xf] %v1117
        %s1150 = sand.u32 %s186, 1
        %s1151 = scalar_lea.sflag [#allocation3], %s1150
        %s1152 = sand.u32 %s186, 1
        %s1153 = smul.addr %s1152, 64
        %s1154 = scalar_lea.vmem [#allocation2], %s1153
        %s1155 = sand.u32 %s212, 1
        %s1156 = scalar_lea.sflag [#allocation5], %s1155
        %s1157 = sand.u32 %s212, 1
        %s1158 = smul.addr %s1157, 64
        %s1159 = scalar_lea.vmem [#allocation4], %s1158
        // Predicated region
        $region49: #{tpu_custom_call.1} parent=47 // pred_check
          %p1160 = pneg %p196
        $region50: #{tpu_custom_call.1} parent=47 // pred_check_branch
          %1162 = sbr.rel (%p1160) target = $region52
        $region51: #{tpu_custom_call.1} parent=47 // pred_region
          %s1164 = ssub.s32 1024, 1024
          %1165 = vsyncadd %s1151, %s1164
          %s1166 = smul.addr %s26, 16
          %s1167 = smul.addr %s1166, 64
          %s1168 = scalar_lea.hbm %s7, %s1167
          %s1169 = sshll.u32 %s1154, 4
          %s1170 = int_to_ptr.vmem [resolvable:$true] %s1169
          %1175 = dma.vmem_to_hbm [thread:$0]  %s1170, 1024, %s1168, %s1151, 64, 64, 4
        $region52: #{tpu_custom_call.1} parent=47 // pred_fallthru
          _
        // Predicated region
        $region53: #{tpu_custom_call.1} parent=47 // pred_check
          %p1176 = pneg %p222
        $region54: #{tpu_custom_call.1} parent=47 // pred_check_branch
          %1178 = sbr.rel (%p1176) target = $region56
        $region55: #{tpu_custom_call.1} parent=47 // pred_region
          %s1180 = ssub.s32 1024, 1024
          %1181 = vsyncadd %s1156, %s1180
          %s1182 = smul.addr %s26, 16
          %s1183 = smul.addr %s1182, 64
          %s1184 = scalar_lea.hbm %s8, %s1183
          %s1185 = sshll.u32 %s1159, 4
          %s1186 = int_to_ptr.vmem [resolvable:$true] %s1185
          %1191 = dma.vmem_to_hbm [thread:$0]  %s1186, 1024, %s1184, %s1156, 64, 64, 4
        $region56: #{tpu_custom_call.1} parent=47 // pred_fallthru
          _
      $region48: #{tpu_custom_call.1} parent=5 // pred_fallthru
        _
      %p1192 = scmp.le.s32.totalorder 2, %s21
      // Predicated region
      $region57: #{tpu_custom_call.1} parent=5 // pred_check
        %p1193 = pneg %p1192
      $region58: #{tpu_custom_call.1} parent=5 // pred_check_branch
        %1195 = sbr.rel (%p1193) target = $region60
      $region59: #{tpu_custom_call.1} parent=5 // pred_region
        %s1196 = ssub.s32 %s21, 2
        // Predicated region
        $region61: #{tpu_custom_call.1} parent=59 // pred_check
          %p1197 = pneg %p202
        $region62: #{tpu_custom_call.1} parent=59 // pred_check_branch
          %1199 = sbr.rel (%p1197) target = $region64
        $region63: #{tpu_custom_call.1} parent=59 // pred_region
          %s1200 = sand.u32 %s187, 1
          %s1201 = scalar_lea.sflag [#allocation3], %s1200
          %s1202 = sand.u32 %s187, 1
          %s1203 = smul.addr %s1202, 64
          %s1204 = scalar_lea.vmem [#allocation2], %s1203
          %1205 = dma.done %s1201, 1024
        $region64: #{tpu_custom_call.1} parent=59 // pred_fallthru
          _
        // Predicated region
        $region65: #{tpu_custom_call.1} parent=59 // pred_check
          %p1206 = pneg %p228
        $region66: #{tpu_custom_call.1} parent=59 // pred_check_branch
          %1208 = sbr.rel (%p1206) target = $region68
        $region67: #{tpu_custom_call.1} parent=59 // pred_region
          %s1209 = sand.u32 %s213, 1
          %s1210 = scalar_lea.sflag [#allocation5], %s1209
          %s1211 = sand.u32 %s213, 1
          %s1212 = smul.addr %s1211, 64
          %s1213 = scalar_lea.vmem [#allocation4], %s1212
          %1214 = dma.done %s1210, 1024
        $region68: #{tpu_custom_call.1} parent=59 // pred_fallthru
          _
      $region60: #{tpu_custom_call.1} parent=5 // pred_fallthru
        _
    $region6: #{tpu_custom_call.1} parent=1 // loop_footer
      %s25 = sadd.s32 1, %s21
    $region7: #{tpu_custom_call.1} parent=1 // loop_footer_branch
      %20 = sbr.rel target = $region3
    $region8: #{tpu_custom_call.1} parent=1 // loop_exit
      _
    %1215 = vsyncpa [#allocation3], 1
    %s1216 = scalar_lea.sflag [#allocation3], 1
    %1217 = vsyncpa %s1216, 1
    %1218 = vsyncpa [#allocation5], 1
    %s1219 = scalar_lea.sflag [#allocation5], 1
    %1220 = vsyncpa %s1219, 1

</llo_original>
